<compile_context>
chip_gen: v6e
topology: v6e:2x2x1
jax: 0.10.0
libtpu: 0.0.40
codegen_flags: <defaults>
</compile_context>

<pallas_src>
import math

import jax
import jax.numpy as jnp
from jax.experimental import pallas as pl
from jax.experimental.pallas import tpu as pltpu


def _round_up(n, m):
    return (n + m - 1) // m * m


def _vmem_capacity_bytes():
    try:
        cap = getattr(pltpu.get_tpu_info(), "vmem_capacity_bytes", None)
        if cap:
            return int(cap)
    except Exception:
        pass
    return 64 * 1024 * 1024  # conservative: v7x per-TensorCore VMEM


def _make_cluster_kernel(alpha):
    power = float(alpha + 1.0) / 2.0
    inv_alpha = 1.0 / float(alpha)

    def kernel(x_ref, ct_ref, csq_ref, o_ref):
        x = x_ref[...]          # (TB, D)      f32
        ct = ct_ref[...]        # (D, K_pad)   f32, centers^T (resident)
        c_sq = csq_ref[...]     # (1, K_pad)   f32, ||c||^2 (1e30 in padded columns)

        # ||x - c||^2 = ||x||^2 + ||c||^2 - 2 x.c   (cross term on the MXU)
        xc = jnp.dot(x, ct, preferred_element_type=jnp.float32)    # (TB, K_pad)
        x_sq = jnp.sum(x * x, axis=-1, keepdims=True)              # (TB, 1)
        norm_sq = jnp.maximum(x_sq + c_sq - 2.0 * xc, 0.0)

        base = 1.0 + norm_sq * inv_alpha     # >= 1; huge in padded cluster columns
        if power == 1.0:                     # alpha == 1 (module default)
            num = pl.reciprocal(base)
        elif power == 2.0:                   # alpha == 3
            r = pl.reciprocal(base)
            num = r * r
        elif power == 0.5:
            num = jax.lax.rsqrt(base)
        elif power == 1.5:
            num = jax.lax.rsqrt(base) * pl.reciprocal(base)
        else:                                # general alpha: base ** (-power)
            num = jnp.exp(-power * jnp.log(base))

        denom = jnp.sum(num, axis=-1, keepdims=True)               # (TB, 1)
        o_ref[...] = num * pl.reciprocal(denom)

    return kernel


def classfier_cluter_forward(x, cluster_centers, alpha=1.0, block_b=512):
    """x: (B, D) float, cluster_centers: (K, D) float -> (B, K) soft assignments."""
    x = x.astype(jnp.float32)
    c = cluster_centers.astype(jnp.float32)
    B, D = x.shape
    K, Dc = c.shape
    assert D == Dc, "embedding dimension mismatch"

    K_pad = _round_up(K, 128)     # lane-dense output / MXU N dim
    D_sub = _round_up(D, 8)       # sublane-padded centers footprint (VMEM sizing)
    D_lane = _round_up(D, 128)    # lane-padded x footprint (VMEM sizing)

    # --- size the batch tile so the working set fits this generation's VMEM --------
    vmem_budget = max(_vmem_capacity_bytes() - 8 * 1024 * 1024, 16 * 1024 * 1024)

    def tile_bytes(tb):
        return 4 * (2 * tb * D_lane        # x tiles (double-buffered)
                    + 2 * tb * K_pad       # output tiles (double-buffered)
                    + 2 * D_sub * K_pad    # resident centers (conservative x2)
                    + 2 * 8 * K_pad        # resident ||c||^2 row
                    + 4 * tb * K_pad       # xc / base / num intermediates
                    + tb * D_lane)         # x*x temp

    TB = _round_up(min(block_b, _round_up(B, 8)), 8)
    while TB > 8 and tile_bytes(TB) > vmem_budget:
        TB = _round_up(TB // 2, 8)
    # TODO(synk): if tile_bytes(8) still exceeds vmem_budget (enormous D), switch to a
    # feature-axis reduction grid instead of shrinking TB further.

    grid = (pl.cdiv(B, TB),)

    # Tiny wrapper-side constants (centers are (K, D) with small K): transpose + pad K.
    ct_p = jnp.zeros((D, K_pad), jnp.float32).at[:, :K].set(c.T)
    c_sq = jnp.sum(c * c, axis=1)                                   # (K,)
    c_sq_p = jnp.full((1, K_pad), 1e30, jnp.float32).at[0, :K].set(c_sq)

    kernel = _make_cluster_kernel(alpha)

    vmem_limit = int(min(vmem_budget, max(tile_bytes(TB) + (4 << 20), 32 << 20)))

    power = float(alpha + 1.0) / 2.0
    cost = pl.CostEstimate(
        flops=2 * B * K_pad * D + 3 * B * D + 10 * B * K_pad,
        transcendentals=0 if power in (0.5, 1.0, 1.5, 2.0) else 2 * B * K_pad,
        bytes_accessed=4 * (B * D + D * K_pad + K_pad + B * K_pad),
    )

    out_padded = pl.pallas_call(
        kernel,
        out_shape=jax.ShapeDtypeStruct((B, K_pad), jnp.float32),
        grid_spec=pltpu.PrefetchScalarGridSpec(
            num_scalar_prefetch=0,
            grid=grid,
            in_specs=[
                pl.BlockSpec((TB, D), lambda i: (i, 0)),        # x: batch-tiled, unpadded
                pl.BlockSpec((D, K_pad), lambda i: (0, 0)),     # centers^T: resident
                pl.BlockSpec((1, K_pad), lambda i: (0, 0)),     # ||c||^2: resident
            ],
            out_specs=pl.BlockSpec((TB, K_pad), lambda i: (i, 0)),
        ),
        compiler_params=pltpu.CompilerParams(
            dimension_semantics=("parallel",),
            vmem_limit_bytes=vmem_limit,
        ),
        cost_estimate=cost,
    )(x, ct_p, c_sq_p)

    # Lane-dense store in-kernel; slice off the K padding here (cheap vs the x stream).
    return out_padded[:, :K]


def reference_forward(x, centers, alpha=1.0):
    diff = x[:, None, :] - centers[None, :, :]
    norm_sq = jnp.sum(diff * diff, axis=2)
    num = 1.0 / (1.0 + norm_sq / alpha)
    power = float(alpha + 1.0) / 2.0
    num = num ** power
    return num / jnp.sum(num, axis=1, keepdims=True)


if __name__ == "__main__":
    key = jax.random.PRNGKey(0)
    kx, kc, kx2, kc2 = jax.random.split(key, 4)

    # Primary test: module defaults (alpha = 1.0), small shapes.
    B, EMB_DIM, N_CLUSTERS, ALPHA = 8, 32, 10, 1.0
    x = jax.random.normal(kx, (B, EMB_DIM), jnp.float32)
    # nn.init.xavier_uniform_ on a (cluster_number, embedding_dimension) tensor.
    bound = math.sqrt(6.0 / (N_CLUSTERS + EMB_DIM))
    centers = jax.random.uniform(kc, (N_CLUSTERS, EMB_DIM), jnp.float32, -bound, bound)

    out = jax.block_until_ready(classfier_cluter_forward(x, centers, alpha=ALPHA))
    ref = reference_forward(x, centers, ALPHA)
    assert out.shape == (B, N_CLUSTERS)
    assert jnp.allclose(jnp.sum(out, axis=1), 1.0, atol=1e-5)
    assert jnp.allclose(out, ref, atol=1e-5, rtol=1e-4), "mismatch vs reference (alpha=1)"

    # Secondary test: ragged batch tile (B % 8 != 0), non-128 D, alpha = 3 (power = 2).
    B2, D2, K2, A2 = 13, 48, 7, 3.0
    x2 = jax.random.normal(kx2, (B2, D2), jnp.float32)
    c2 = jax.random.normal(kc2, (K2, D2), jnp.float32) * 0.1
    out2 = jax.block_until_ready(classfier_cluter_forward(x2, c2, alpha=A2))
    ref2 = reference_forward(x2, c2, A2)
    assert out2.shape == (B2, K2)
    assert jnp.allclose(out2, ref2, atol=1e-5, rtol=1e-4), "mismatch vs reference (alpha=3)"

    print("KERNEL_OK")
</pallas_src>

<mosaic_0001>
module attributes {stable_mosaic.version = 11 : i64} {
  func.func @kernel(%arg0: i32, %arg1: memref<8x32xf32, #tpu.memory_space<vmem>>, %arg2: memref<32x128xf32, #tpu.memory_space<vmem>>, %arg3: memref<1x128xf32, #tpu.memory_space<vmem>>, %arg4: memref<8x128xf32, #tpu.memory_space<vmem>>) attributes {dimension_semantics = [#tpu.dimension_semantics<parallel>], iteration_bounds = array<i64: 1>, scalar_prefetch = 0 : i64, scratch_operands = 0 : i64, tpu.core_type = #tpu.core_type<tc>, window_params = [{transform_indices = @transform_0, window_bounds = array<i64: 8, 32>}, {pipeline_mode = #tpu.pipeline_mode<synchronous>, transform_indices = @transform_1, window_bounds = array<i64: 32, 128>}, {pipeline_mode = #tpu.pipeline_mode<synchronous>, transform_indices = @transform_2, window_bounds = array<i64: 1, 128>}, {transform_indices = @transform_3, window_bounds = array<i64: 8, 128>}]} {
    %c0 = arith.constant 0 : index
    %c0_0 = arith.constant 0 : index
    %0 = vector.load %arg1[%c0, %c0_0] : memref<8x32xf32, #tpu.memory_space<vmem>>, vector<8x32xf32>
    %c0_1 = arith.constant 0 : index
    %c0_2 = arith.constant 0 : index
    %1 = vector.load %arg2[%c0_1, %c0_2] : memref<32x128xf32, #tpu.memory_space<vmem>>, vector<32x128xf32>
    %c0_3 = arith.constant 0 : index
    %c0_4 = arith.constant 0 : index
    %2 = vector.load %arg3[%c0_3, %c0_4] : memref<1x128xf32, #tpu.memory_space<vmem>>, vector<1x128xf32>
    %cst = arith.constant dense<0.000000e+00> : vector<8x128xf32>
    %3 = tpu.matmul %0, %1, %cst {dimension_numbers = #tpu.dot_dimension_numbers<[1], [0], [0], [1], [0, 0, 1, 1], [], []>} : vector<8x32xf32>, vector<32x128xf32>, vector<8x128xf32> -> vector<8x128xf32>
    %4 = arith.mulf %0, %0 : vector<8x32xf32>
    %cst_5 = arith.constant dense<0.000000e+00> : vector<8xf32>
    %5 = vector.multi_reduction <add>, %4, %cst_5 [1] : vector<8x32xf32> to vector<8xf32>
    %6 = vector.shape_cast %5 : vector<8xf32> to vector<8x1xf32>
    %7 = vector.broadcast %6 : vector<8x1xf32> to vector<8x128xf32>
    %8 = vector.broadcast %2 : vector<1x128xf32> to vector<8x128xf32>
    %9 = arith.addf %7, %8 : vector<8x128xf32>
    %cst_6 = arith.constant 2.000000e+00 : f32
    %10 = vector.broadcast %cst_6 : f32 to vector<8x128xf32>
    %11 = arith.mulf %10, %3 : vector<8x128xf32>
    %12 = arith.subf %9, %11 : vector<8x128xf32>
    %cst_7 = arith.constant 0.000000e+00 : f32
    %13 = vector.broadcast %cst_7 : f32 to vector<8x128xf32>
    %14 = arith.maximumf %12, %13 : vector<8x128xf32>
    %cst_8 = arith.constant 1.000000e+00 : f32
    %15 = vector.broadcast %cst_8 : f32 to vector<8x128xf32>
    %16 = arith.mulf %14, %15 : vector<8x128xf32>
    %cst_9 = arith.constant 1.000000e+00 : f32
    %17 = vector.broadcast %cst_9 : f32 to vector<8x128xf32>
    %18 = arith.addf %17, %16 : vector<8x128xf32>
    %19 = tpu.reciprocal %18 : vector<8x128xf32> -> vector<8x128xf32>
    %cst_10 = arith.constant dense<0.000000e+00> : vector<8xf32>
    %20 = vector.multi_reduction <add>, %19, %cst_10 [1] : vector<8x128xf32> to vector<8xf32>
    %21 = vector.shape_cast %20 : vector<8xf32> to vector<8x1xf32>
    %22 = tpu.reciprocal %21 : vector<8x1xf32> -> vector<8x1xf32>
    %23 = vector.broadcast %22 : vector<8x1xf32> to vector<8x128xf32>
    %24 = arith.mulf %19, %23 : vector<8x128xf32>
    %c0_11 = arith.constant 0 : index
    %c0_12 = arith.constant 0 : index
    %25 = vector.load %arg4[%c0_11, %c0_12] : memref<8x128xf32, #tpu.memory_space<vmem>>, vector<8x128xf32>
    tpu.vector_store %arg4[%c0_11, %c0_12], %24 {strides = array<i32>} : memref<8x128xf32, #tpu.memory_space<vmem>>, vector<8x128xf32>,
    return
  }
  func.func @transform_0(%arg0: i32) -> (i32, i32) {
    %c0_i32 = arith.constant 0 : i32
    %c0_i32_0 = arith.constant 0 : i32
    return %arg0, %c0_i32 : i32, i32
  }
  func.func @transform_1(%arg0: i32) -> (i32, i32) {
    %c0_i32 = arith.constant 0 : i32
    %c0_i32_0 = arith.constant 0 : i32
    %c0_i32_1 = arith.constant 0 : i32
    return %c0_i32, %c0_i32_0 : i32, i32
  }
  func.func @transform_2(%arg0: i32) -> (i32, i32) {
    %c0_i32 = arith.constant 0 : i32
    %c0_i32_0 = arith.constant 0 : i32
    %c0_i32_1 = arith.constant 0 : i32
    return %c0_i32, %c0_i32_0 : i32, i32
  }
  func.func @transform_3(%arg0: i32) -> (i32, i32) {
    %c0_i32 = arith.constant 0 : i32
    %c0_i32_0 = arith.constant 0 : i32
    return %arg0, %c0_i32 : i32, i32
  }
}

</mosaic_0001>

<llo_original>
// kernel: tpu_custom_call.1
$region0: #{tpu_custom_call.1}
  #allocation0 [shape = 'u32[]', space=smem, size = 0x4, offset = 0x4, fixed_abs, tag = 'smem constant byte address 0x4 - core index']
  #allocation1 [shape = 'u32[144,128]{1,0:T(1,128)}', space=vmem, size = 0x12000, scoped, tag = 'internal scratch']
  %s0 = inlined_call_operand.hbm [shape: f32[8,32], index: 0, kind: input, shape index: {}]
  %s1 = inlined_call_operand.hbm [shape: f32[32,128], index: 1, kind: input, shape index: {}]
  %s2 = inlined_call_operand.vmem [shape: f32[1,128], index: 2, kind: input, shape index: {}]
  %s3 = inlined_call_operand.hbm [shape: f32[8,128], index: 3, kind: output, shape index: {}]
  %s4 = sld [smem:[#allocation0]]
  $region30: #{tpu_custom_call.1} parent=0
    _
  %s6 = ssub.s32 1, %s4
  %s7 = scalar_select 0, %s6, %s4
  $region1: #{tpu_custom_call.1} parent=0
    #allocation2 [shape = 'u8[4096]{0}', space=vmem, size = 0x1000, scoped, tag = 'input window, operand 0, single buffered']
    #allocation3 [shape = 's32[1]{0}', space=sflag, size = 0x4, scoped, tag = 'scoped memory for tpu_custom_call.1']
    #allocation4 [shape = 's32[1]{0}', space=sflag, size = 0x4, scoped, tag = 'scoped memory for tpu_custom_call.1']
    #allocation5 [shape = 'u8[16384]{0}', space=vmem, size = 0x4000, scoped, tag = 'input window, operand 1, single buffered']
    #allocation6 [shape = 's32[1]{0}', space=sflag, size = 0x4, scoped, tag = 'scoped memory for tpu_custom_call.1']
    #allocation7 [shape = 'u8[4096]{0}', space=vmem, size = 0x1000, scoped, tag = 'output window, operand 0, single buffered']
    %8 = vsyncpa [#allocation3], 0
    %9 = vsyncpa [#allocation6], 0
    %10 = vsyncpa [#allocation4], 0
    // Predicated region
    $region2: #{tpu_custom_call.1} parent=1 // pred_check
      _
    $region3: #{tpu_custom_call.1} parent=1 // pred_check_branch
      %12 = sbr.rel (0) target = $region5
    $region4: #{tpu_custom_call.1} parent=1 // pred_region
      %s14 = ssub.s32 128, 128
      %15 = vsyncadd [#allocation3], %s14
      %s17 = sshll.u32 [#allocation2], 4
      %s18 = int_to_ptr.vmem [resolvable:$true] %s17
      %20 = dma.hbm_to_vmem [thread:$0]  %s0, 128, %s18, [#allocation3]
    $region5: #{tpu_custom_call.1} parent=1 // pred_fallthru
      _
    // Predicated region
    $region6: #{tpu_custom_call.1} parent=1 // pred_check
      _
    $region7: #{tpu_custom_call.1} parent=1 // pred_check_branch
      %22 = sbr.rel (0) target = $region9
    $region8: #{tpu_custom_call.1} parent=1 // pred_region
      %s24 = ssub.s32 512, 512
      %25 = vsyncadd [#allocation6], %s24
      %s26 = sshll.u32 [#allocation5], 4
      %s27 = int_to_ptr.vmem [resolvable:$true] %s26
      %32 = dma.hbm_to_vmem [thread:$0]  %s1, 512, %s27, [#allocation6], 128, 128, 8
    $region9: #{tpu_custom_call.1} parent=1 // pred_fallthru
      _
    // Predicated region
    $region10: #{tpu_custom_call.1} parent=1 // pred_check
      _
    $region11: #{tpu_custom_call.1} parent=1 // pred_check_branch
      %34 = sbr.rel (0) target = $region13
    $region12: #{tpu_custom_call.1} parent=1 // pred_region
      _
    $region13: #{tpu_custom_call.1} parent=1 // pred_fallthru
      _
    // Predicated region
    $region14: #{tpu_custom_call.1} parent=1 // pred_check
      _
    $region15: #{tpu_custom_call.1} parent=1 // pred_check_branch
      %36 = sbr.rel (0) target = $region17
    $region16: #{tpu_custom_call.1} parent=1 // pred_region
      %37 = dma.done [#allocation3], 128
    $region17: #{tpu_custom_call.1} parent=1 // pred_fallthru
      _
    // Predicated region
    $region18: #{tpu_custom_call.1} parent=1 // pred_check
      _
    $region19: #{tpu_custom_call.1} parent=1 // pred_check_branch
      %39 = sbr.rel (0) target = $region21
    $region20: #{tpu_custom_call.1} parent=1 // pred_region
      %40 = dma.done [#allocation6], 512
    $region21: #{tpu_custom_call.1} parent=1 // pred_fallthru
      _
    %v41 = vld [vmem:[#allocation2] sm:$0xff]
    %v42 = vld [vmem:[#allocation5] sm:$0xff]
    %v43 = vld [vmem:[#allocation5 + $0x8] sm:$0xff]
    %v44 = vld [vmem:[#allocation5 + $0x10] sm:$0xff]
    %v45 = vld [vmem:[#allocation5 + $0x18] sm:$0xff]
    %v46 = vld [vmem:[%s2] sm:$0x1]
    %vm47 = vcmask 261120
    %v49 = vsel %vm47, %v41, 0
    %51 = vmatprep.subr.mxu0 0.0
    %52 = vmatpush1.msra.mxu0 0.0
    %53 = vmatprep.subr.mxu0 0.0
    %54 = vmatpush1.msra.mxu0 0.0
    %55 = vmatprep.subr.mxu0 0.0
    %56 = vmatpush1.msra.mxu0 0.0
    %57 = vmatprep.subr.mxu0 0.0
    %58 = vmatpush1.msra.mxu0 0.0
    %59 = vmatprep.subr.mxu0 0.0
    %60 = vmatpush1.msra.mxu0 0.0
    %61 = vmatprep.subr.mxu0 0.0
    %62 = vmatpush1.msra.mxu0 0.0
    %63 = vmatprep.subr.mxu0 0.0
    %64 = vmatpush1.msra.mxu0 0.0
    %65 = vmatprep.subr.mxu0 0.0
    %66 = vmatpush1.msra.mxu0 0.0
    %67 = vmatprep.subr.mxu0 0.0
    %68 = vmatpush1.msra.mxu0 0.0
    %69 = vmatprep.subr.mxu0 0.0
    %70 = vmatpush1.msra.mxu0 0.0
    %71 = vmatprep.subr.mxu0 0.0
    %72 = vmatpush1.msra.mxu0 0.0
    %73 = vmatprep.subr.mxu0 0.0
    %74 = vmatpush1.msra.mxu0 0.0
    %75 = vmatprep.subr.mxu0 0.0
    %76 = vmatpush1.msra.mxu0 %v45
    %77 = vmatprep.subr.mxu0 0.0
    %78 = vmatpush1.msra.mxu0 %v44
    %79 = vmatprep.subr.mxu0 0.0
    %80 = vmatpush1.msra.mxu0 %v43
    %81 = vmatprep.subr.mxu0 0.0
    %82 = vmatpush1.msra.mxu0 %v42
    %83 = vmatprep.subr.mxu0 0.0
    %84 = vmatpush2.msra.mxu0 0.0
    %85 = vmatprep.subr.mxu0 0.0
    %86 = vmatpush2.msra.mxu0 0.0
    %87 = vmatprep.subr.mxu0 0.0
    %88 = vmatpush2.msra.mxu0 0.0
    %89 = vmatprep.subr.mxu0 0.0
    %90 = vmatpush2.msra.mxu0 0.0
    %91 = vmatprep.subr.mxu0 0.0
    %92 = vmatpush2.msra.mxu0 0.0
    %93 = vmatprep.subr.mxu0 0.0
    %94 = vmatpush2.msra.mxu0 0.0
    %95 = vmatprep.subr.mxu0 0.0
    %96 = vmatpush2.msra.mxu0 0.0
    %97 = vmatprep.subr.mxu0 0.0
    %98 = vmatpush2.msra.mxu0 0.0
    %99 = vmatprep.subr.mxu0 0.0
    %100 = vmatpush2.msra.mxu0 0.0
    %101 = vmatprep.subr.mxu0 0.0
    %102 = vmatpush2.msra.mxu0 0.0
    %103 = vmatprep.subr.mxu0 0.0
    %104 = vmatpush2.msra.mxu0 0.0
    %105 = vmatprep.subr.mxu0 0.0
    %106 = vmatpush2.msra.mxu0 0.0
    %107 = vmatprep.subr.mxu0 0.0
    %108 = vmatpush2.msra.mxu0 0.0
    %109 = vmatprep.subr.mxu0 0.0
    %110 = vmatpush2.msra.mxu0 0.0
    %111 = vmatprep.subr.mxu0 0.0
    %112 = vmatpush2.msra.mxu0 0.0
    %113 = vmatprep.subr.mxu0 0.0
    %114 = vmatpush2.msra.mxu0 0.0
    %115 = vmatprep.mubr.f32.mxu0 0.0
    %116 = vmatmul.mubr.f32.gmra.mxu0 %v49
    %v117 = vpop.f32.mrf.mxu0
    %v118 = vadd.f32 0.0, %v117
    %v119 = vpop.f32.mrf.mxu0
    %120 = vdwg.mxu0
    %v121 = vmul.f32 %v41, %v41
    %v122 = vsel %vm47, %v121, 0.0
    %123 = vadd.xlane.f32.xlu0 %v122
    %v124 = vpop.xlane.xlu0 %123
    %v126 = vlaneseq
    %v127 = vshrl.u32 %v126, 7
    %v128 = vsub.s32 0, %v127
    %v129 = vrot.slane %v46, %v128
    %v131 = vadd.f32 %v124, %v129
    %v132 = vmul.f32 %v118, 2.0
    %v133 = vsub.f32 %v131, %v132
    %v134 = vmax.f32 %v133, 0.0
    %v135 = vadd.f32 %v134, 1.0
    %v136 = vrcp.pop %v135
    %137 = vadd.xlane.f32.xlu0 %v136
    %v138 = vpop.xlane.xlu0 %137
    %v139 = vrcp.pop %v138
    %v140 = vmul.f32 %v136, %v139
    %141 = vst [vmem:[#allocation7] sm:$0xff] %v140
    // Predicated region
    $region22: #{tpu_custom_call.1} parent=1 // pred_check
      _
    $region23: #{tpu_custom_call.1} parent=1 // pred_check_branch
      %143 = sbr.rel (0) target = $region25
    $region24: #{tpu_custom_call.1} parent=1 // pred_region
      %s145 = ssub.s32 128, 128
      %146 = vsyncadd [#allocation4], %s145
      %s148 = sshll.u32 [#allocation7], 4
      %s149 = int_to_ptr.vmem [resolvable:$true] %s148
      %151 = dma.vmem_to_hbm [thread:$0]  %s149, 128, %s3, [#allocation4]
    $region25: #{tpu_custom_call.1} parent=1 // pred_fallthru
      _
    // Predicated region
    $region26: #{tpu_custom_call.1} parent=1 // pred_check
      _
    $region27: #{tpu_custom_call.1} parent=1 // pred_check_branch
      %153 = sbr.rel (0) target = $region29
    $region28: #{tpu_custom_call.1} parent=1 // pred_region
      %154 = dma.done [#allocation4], 128
    $region29: #{tpu_custom_call.1} parent=1 // pred_fallthru
      _
    %155 = vsyncpa [#allocation3], 1
    %156 = vsyncpa [#allocation6], 1
    %157 = vsyncpa [#allocation4], 1

</llo_original>
